<compile_context>
chip_gen: v6e
topology: v6e:2x2x1
jax: 0.10.0
libtpu: 0.0.40
codegen_flags: <defaults>
</compile_context>

<pallas_src>
import jax
import jax.numpy as jnp
from jax.experimental import pallas as pl
from jax.experimental.pallas import tpu as pltpu


def _swish_kernel(x_ref, o_ref):
    xf = x_ref[...].astype(jnp.float32)
    o_ref[...] = (xf * jax.nn.sigmoid(xf)).astype(o_ref.dtype)


def _tpu_params():
    """Generation-aware (block_bytes, vmem_limit_bytes, num_tensorcores)."""
    block_bytes = 4 * 1024 * 1024       # v5e/v6e streaming plateau
    vmem_limit = 32 * 1024 * 1024       # > v5e's 16 MiB scoped default
    num_cores = 1
    try:
        info = pltpu.get_tpu_info()
        vmem_cap = getattr(info, "vmem_capacity_bytes", 128 * 1024 * 1024)
        if vmem_cap <= 64 * 1024 * 1024:
            # v7x-class: 64 MiB VMEM/TC, 2 TCs/chip, ~3.2 TB/s HBM.
            block_bytes = 8 * 1024 * 1024
            vmem_limit = 48 * 1024 * 1024
            num_cores = 2
        for attr in ("num_tensorcores", "tensor_cores_per_chip", "num_cores"):
            v = getattr(info, attr, None)
            if isinstance(v, int) and v > 0:
                num_cores = max(num_cores, v)
                break
    except Exception:
        pass
    return block_bytes, vmem_limit, num_cores


def _swish_pallas(x2d, block_bytes, vmem_limit, num_cores):
    rows, lanes = x2d.shape
    dtype = x2d.dtype
    itemsize = jnp.dtype(dtype).itemsize

    # Sublane packing: 8 rows/vreg for 32-bit, 16 for 16-bit, 32 for 8-bit.
    packing = max(1, 4 // itemsize) * 8

    bytes_per_row = lanes * itemsize
    rows_per_block = max(1, block_bytes // bytes_per_row)
    tile_r = max(packing, (rows_per_block // packing) * packing)

    if num_cores > 1 and rows > packing:
        # Keep >= 2 grid steps per TensorCore so dimension_semantics=("parallel",)
        # actually shards the stream across cores instead of a 1-step grid.
        cap = pl.cdiv(rows, 2 * num_cores)
        cap = max(packing, (cap // packing) * packing)
        tile_r = min(tile_r, cap)

    if tile_r >= rows:
        tile_r = rows                    # full extent: single-block axis is legal
    grid = (pl.cdiv(rows, tile_r),)      # partial last block is masked by Pallas

    n_elems = rows * lanes
    return pl.pallas_call(
        _swish_kernel,
        out_shape=jax.ShapeDtypeStruct((rows, lanes), dtype),
        grid=grid,
        in_specs=[pl.BlockSpec((tile_r, lanes), lambda i: (i, 0))],
        out_specs=pl.BlockSpec((tile_r, lanes), lambda i: (i, 0)),
        compiler_params=pltpu.CompilerParams(
            dimension_semantics=("parallel",),
            vmem_limit_bytes=vmem_limit,
        ),
        cost_estimate=pl.CostEstimate(
            flops=4 * n_elems,
            transcendentals=n_elems,
            bytes_accessed=2 * n_elems * itemsize,
        ),
    )(x2d)


def swish(x: jax.Array, *, block_bytes: int | None = None,
          min_pallas_bytes: int = 1 << 20) -> jax.Array:
    """Elementwise Swish: x * sigmoid(x). Accepts any floating shape/dtype."""
    orig_shape = x.shape
    dtype = x.dtype
    n = x.size
    if n == 0:
        return x
    itemsize = jnp.dtype(dtype).itemsize

    # Small-input fast path: let XLA fuse it into the surrounding graph.
    if n * itemsize < min_pallas_bytes:
        xf = x.astype(jnp.float32)
        return (xf * jax.nn.sigmoid(xf)).astype(dtype)

    blk, vmem_limit, num_cores = _tpu_params()
    if block_bytes is None:
        block_bytes = blk

    x_flat = x.reshape(-1)

    # Widest lane-dense last dim (multiple of 128) that divides n: the aligned
    # fast path needs no padding/copy at all.
    lanes = None
    for c in (4096, 2048, 1024, 512, 256, 128):
        if n % c == 0:
            lanes = c
            break

    if lanes is not None:
        out2d = _swish_pallas(x_flat.reshape(n // lanes, lanes),
                              block_bytes, vmem_limit, num_cores)
        return out2d.reshape(orig_shape)

    # Unaligned: stream the 128-aligned prefix through the kernel; compute the
    # (<128-element) tail with plain jnp.  No full-array pad/slice round trips.
    lanes = 128
    n_main = (n // lanes) * lanes
    tail = x_flat[n_main:].astype(jnp.float32)
    tail_out = (tail * jax.nn.sigmoid(tail)).astype(dtype)
    if n_main == 0:
        return tail_out.reshape(orig_shape)
    main_out = _swish_pallas(x_flat[:n_main].reshape(n_main // lanes, lanes),
                             block_bytes, vmem_limit, num_cores)
    out_flat = jnp.concatenate([main_out.reshape(-1), tail_out])
    return out_flat.reshape(orig_shape)


if __name__ == "__main__":
    key = jax.random.PRNGKey(0)
    # NCHW activations, matching the PyTorch convention used throughout FBCNet.
    x = jax.random.normal(key, (2, 4, 16, 16), dtype=jnp.float32)
    y_ref = x * jax.nn.sigmoid(x)

    # Default path: KB-scale input takes the fused-jnp fast path.
    y_fast = swish(x)
    # Force the Pallas streaming path on the same input to exercise the kernel.
    y_kernel = swish(x, min_pallas_bytes=0)
    jax.block_until_ready((y_fast, y_kernel))

    assert y_kernel.shape == x.shape and y_kernel.dtype == x.dtype
    assert jnp.allclose(y_fast, y_ref, atol=1e-5, rtol=1e-5)
    assert jnp.allclose(y_kernel, y_ref, atol=1e-5, rtol=1e-5)

    # Also exercise the unaligned (non-multiple-of-128) prefix+tail path.
    x2 = jax.random.normal(jax.random.PRNGKey(1), (3, 7, 13), dtype=jnp.float32)
    y2 = swish(x2, min_pallas_bytes=0)
    jax.block_until_ready(y2)
    assert jnp.allclose(y2, x2 * jax.nn.sigmoid(x2), atol=1e-5, rtol=1e-5)

    print("KERNEL_OK")
</pallas_src>

<mosaic_0001>
module attributes {stable_mosaic.version = 11 : i64} {
  func.func @_swish_kernel(%arg0: i32, %arg1: memref<1x2048xf32, #tpu.memory_space<vmem>>, %arg2: memref<1x2048xf32, #tpu.memory_space<vmem>>) attributes {dimension_semantics = [#tpu.dimension_semantics<parallel>], iteration_bounds = array<i64: 1>, scalar_prefetch = 0 : i64, scratch_operands = 0 : i64, tpu.core_type = #tpu.core_type<tc>, window_params = [{transform_indices = @transform_0, window_bounds = array<i64: 1, 2048>}, {transform_indices = @transform_1, window_bounds = array<i64: 1, 2048>}]} {
    %c0 = arith.constant 0 : index
    %c0_0 = arith.constant 0 : index
    %0 = vector.load %arg1[%c0, %c0_0] : memref<1x2048xf32, #tpu.memory_space<vmem>>, vector<1x2048xf32>
    %1 = arith.negf %0 : vector<1x2048xf32>
    %2 = math.exp %1 : vector<1x2048xf32>
    %cst = arith.constant 1.000000e+00 : f32
    %3 = vector.broadcast %cst : f32 to vector<1x2048xf32>
    %4 = arith.addf %3, %2 : vector<1x2048xf32>
    %5 = arith.divf %3, %4 : vector<1x2048xf32>
    %6 = arith.mulf %0, %5 : vector<1x2048xf32>
    %c0_1 = arith.constant 0 : index
    %c0_2 = arith.constant 0 : index
    %7 = vector.load %arg2[%c0_1, %c0_2] : memref<1x2048xf32, #tpu.memory_space<vmem>>, vector<1x2048xf32>
    tpu.vector_store %arg2[%c0_1, %c0_2], %6 {strides = array<i32>} : memref<1x2048xf32, #tpu.memory_space<vmem>>, vector<1x2048xf32>,
    return
  }
  func.func @transform_0(%arg0: i32) -> (i32, i32) {
    %c0_i32 = arith.constant 0 : i32
    %c0_i32_0 = arith.constant 0 : i32
    return %arg0, %c0_i32 : i32, i32
  }
  func.func @transform_1(%arg0: i32) -> (i32, i32) {
    %c0_i32 = arith.constant 0 : i32
    %c0_i32_0 = arith.constant 0 : i32
    return %arg0, %c0_i32 : i32, i32
  }
}

</mosaic_0001>

<llo_original>
// kernel: tpu_custom_call.1
$region0: #{tpu_custom_call.1}
  #allocation0 [shape = 'u32[]', space=smem, size = 0x4, offset = 0x4, fixed_abs, tag = 'smem constant byte address 0x4 - core index']
  #allocation1 [shape = 'u32[144,128]{1,0:T(1,128)}', space=vmem, size = 0x12000, scoped, tag = 'internal scratch']
  %s0 = inlined_call_operand.hbm [shape: f32[1,2048], index: 0, kind: input, shape index: {}]
  %s1 = inlined_call_operand.hbm [shape: f32[1,2048], index: 1, kind: output, shape index: {}]
  %s2 = sld [smem:[#allocation0]]
  $region18: #{tpu_custom_call.1} parent=0
    _
  %s4 = ssub.s32 1, %s2
  %s5 = scalar_select 0, %s4, %s2
  $region1: #{tpu_custom_call.1} parent=0
    #allocation2 [shape = 'u8[8192]{0}', space=vmem, size = 0x2000, scoped, tag = 'input window, operand 0, single buffered']
    #allocation3 [shape = 's32[1]{0}', space=sflag, size = 0x4, scoped, tag = 'scoped memory for tpu_custom_call.1']
    #allocation4 [shape = 's32[1]{0}', space=sflag, size = 0x4, scoped, tag = 'scoped memory for tpu_custom_call.1']
    #allocation5 [shape = 'u8[8192]{0}', space=vmem, size = 0x2000, scoped, tag = 'output window, operand 0, single buffered']
    %6 = vsyncpa [#allocation3], 0
    %7 = vsyncpa [#allocation4], 0
    // Predicated region
    $region2: #{tpu_custom_call.1} parent=1 // pred_check
      _
    $region3: #{tpu_custom_call.1} parent=1 // pred_check_branch
      %9 = sbr.rel (0) target = $region5
    $region4: #{tpu_custom_call.1} parent=1 // pred_region
      %s11 = ssub.s32 256, 256
      %12 = vsyncadd [#allocation3], %s11
      %s14 = sshll.u32 [#allocation2], 4
      %s15 = int_to_ptr.vmem [resolvable:$true] %s14
      %17 = dma.hbm_to_vmem [thread:$0]  %s0, 256, %s15, [#allocation3]
    $region5: #{tpu_custom_call.1} parent=1 // pred_fallthru
      _
    // Predicated region
    $region6: #{tpu_custom_call.1} parent=1 // pred_check
      _
    $region7: #{tpu_custom_call.1} parent=1 // pred_check_branch
      %19 = sbr.rel (0) target = $region9
    $region8: #{tpu_custom_call.1} parent=1 // pred_region
      %20 = dma.done [#allocation3], 256
    $region9: #{tpu_custom_call.1} parent=1 // pred_fallthru
      _
    %v21 = vld [vmem:[#allocation2] sm:$0xff]
    %v22 = vld [vmem:[#allocation2 + $0x8] sm:$0xff]
    %v23 = vxor.u32 %v21, 2147483648
    %v24 = vxor.u32 %v22, 2147483648
    %v25 = vmul.f32 %v23, 1.442695
    %v26 = vpow.pop %v25
    %v27 = vmul.f32 %v24, 1.442695
    %v28 = vpow.pop %v27
    %v29 = vadd.f32 %v26, 1.0
    %v30 = vadd.f32 %v28, 1.0
    %v31 = vrcp.pop %v29
    %v32 = vmul.f32 1.0, %v31
    %v33 = vrcp.pop %v30
    %v34 = vmul.f32 1.0, %v33
    %v35 = vmul.f32 %v21, %v32
    %v36 = vmul.f32 %v22, %v34
    %37 = vst [vmem:[#allocation5] sm:$0xff] %v35
    %38 = vst [vmem:[#allocation5 + $0x8] sm:$0xff] %v36
    // Predicated region
    $region10: #{tpu_custom_call.1} parent=1 // pred_check
      _
    $region11: #{tpu_custom_call.1} parent=1 // pred_check_branch
      %40 = sbr.rel (0) target = $region13
    $region12: #{tpu_custom_call.1} parent=1 // pred_region
      %s42 = ssub.s32 256, 256
      %43 = vsyncadd [#allocation4], %s42
      %s45 = sshll.u32 [#allocation5], 4
      %s46 = int_to_ptr.vmem [resolvable:$true] %s45
      %48 = dma.vmem_to_hbm [thread:$0]  %s46, 256, %s1, [#allocation4]
    $region13: #{tpu_custom_call.1} parent=1 // pred_fallthru
      _
    // Predicated region
    $region14: #{tpu_custom_call.1} parent=1 // pred_check
      _
    $region15: #{tpu_custom_call.1} parent=1 // pred_check_branch
      %50 = sbr.rel (0) target = $region17
    $region16: #{tpu_custom_call.1} parent=1 // pred_region
      %51 = dma.done [#allocation4], 256
    $region17: #{tpu_custom_call.1} parent=1 // pred_fallthru
      _
    %52 = vsyncpa [#allocation3], 1
    %53 = vsyncpa [#allocation4], 1

</llo_original>
